<compile_context>
chip_gen: v6e
topology: v6e:2x2x1
jax: 0.10.0
libtpu: 0.0.40
codegen_flags: <defaults>
</compile_context>

<pallas_src>
import functools

import jax
import jax.numpy as jnp
from jax.experimental import pallas as pl
from jax.experimental.pallas import tpu as pltpu


def attention_kernel(x_ref, w_ref, b_ref, o_ref, m_sc, l_sc, acc_sc,
                     *, t_total, t_tile):
    # x_ref : (TB, TT, H) VMEM  -- a (batch-tile, time-tile) slab, native dtype
    # w_ref : (1, H)      VMEM  -- nn.Linear(H, 1) weight (row vector, f32)
    # b_ref : (1, 1)      SMEM  -- nn.Linear bias (scalar)
    # o_ref : (TB, H)     VMEM  -- context vectors (lane-dense 2-D output slab)
    # m_sc/l_sc : (TB, 1) f32 VMEM scratch -- running softmax max / denom
    # acc_sc    : (TB, H) f32 VMEM scratch -- running unnormalized context
    t_idx = pl.program_id(1)
    n_t = pl.num_programs(1)

    @pl.when(t_idx == 0)
    def _init():
        m_sc[...] = jnp.full_like(m_sc, -jnp.inf)
        l_sc[...] = jnp.zeros_like(l_sc)
        acc_sc[...] = jnp.zeros_like(acc_sc)

    x = x_ref[...]                                   # (TB, TT, H), native dtype
    tb, tt, h = x.shape
    w = w_ref[...].astype(x.dtype)                   # (1, H)
    bias = b_ref[0, 0]                               # f32 scalar from SMEM

    ragged_t = (t_total % t_tile) != 0
    if ragged_t:
        # Zero padded timesteps so garbage (possibly inf/NaN) VMEM never feeds
        # the MXU contractions; their scores are then masked to -inf below.
        t_pos = t_idx * t_tile + jax.lax.broadcasted_iota(jnp.int32, (tb, tt), 1)
        valid = t_pos < t_total                      # (TB, TT)
        x = jnp.where(valid[:, :, None], x, jnp.zeros_like(x))

    # scores[b, t] = <x[b, t, :], w> + bias   -- MXU contraction (q = 1),
    # same "bqd,bkd->bqk" form as flash attention, no transposes needed.
    w_b = jnp.broadcast_to(w[None], (tb, 1, h))      # (TB, 1, H)
    scores = jnp.einsum("bqh,bth->bqt", w_b, x,
                        preferred_element_type=jnp.float32)[:, 0, :] + bias
    if ragged_t:
        scores = jnp.where(valid, scores, -jnp.inf)  # padded steps contribute 0

    # Online (streaming) softmax over the time axis, normalization deferred.
    m_prev = m_sc[...]                               # (TB, 1)
    m_new = jnp.maximum(m_prev, jnp.max(scores, axis=1, keepdims=True))
    alpha = jnp.exp(m_prev - m_new)                  # rescale of old partials
    e = jnp.exp(scores - m_new)                      # (TB, TT) f32

    l_sc[...] = alpha * l_sc[...] + jnp.sum(e, axis=1, keepdims=True)

    # Unnormalized partial context: per batch row, (1, TT) @ (TT, H) on the MXU.
    # `e` is cast to x.dtype (no-op for f32; bf16-native MXU path for bf16 x).
    ctx = jnp.einsum("bqt,bth->bqh", e[:, None, :].astype(x.dtype), x,
                     preferred_element_type=jnp.float32)[:, 0, :]  # (TB, H)
    acc_sc[...] = alpha * acc_sc[...] + ctx
    m_sc[...] = m_new

    @pl.when(t_idx == n_t - 1)
    def _finalize():
        # Exact divide keeps 1e-5 agreement with the f32 reference.
        o_ref[...] = (acc_sc[...] / l_sc[...]).astype(o_ref.dtype)


def _choose_tiles(B, T, H, itemsize, block_budget_bytes):
    """Pick (tb, tt) so a (tb, tt, H) input block fits the budget.

    Full-T blocks when possible (single T step); otherwise tile T (online
    softmax path).  No 2-step cap: only keep >=4 batch steps for pipelining
    when B is big enough, and round tb to a multiple of 8 for clean layouts.
    """
    itemsize = max(int(itemsize), 1)
    row_bytes = T * H * itemsize                 # one batch row, all timesteps
    if row_bytes <= block_budget_bytes:
        tt = T
        tb = max(1, block_budget_bytes // row_bytes)
        if tb >= B:
            tb = B                               # whole batch in one block
        else:
            tb = min(tb, max(1, pl.cdiv(B, 4)))  # >=4 pipelined batch steps
            if tb > 8:
                tb = (tb // 8) * 8               # sublane-friendly blocks
    else:
        # Sequence too long even for one row: tile the time axis instead.
        tb = 1
        tt = max(8, (block_budget_bytes // (H * itemsize)) // 8 * 8)
        tt = min(tt, T)
    return tb, tt


def _vmem_limit_bytes():
    """3/4 of physical VMEM, capped at 96 MiB (=> ~48 MiB on 64-MiB v7x)."""
    try:
        cap = int(pltpu.get_tpu_info().vmem_capacity_bytes)
        return min(96 * 1024 * 1024, max(32 * 1024 * 1024, (cap * 3) // 4))
    except Exception:
        return 48 * 1024 * 1024


def attention_forward(lstm_output, weight, bias, *,
                      block_budget_bytes=8 * 1024 * 1024):
    """lstm_output: (B, T, H); weight: (1, H); bias: (1, 1) or (1,) -> (B, H)"""
    B, T, H = lstm_output.shape
    itemsize = jnp.dtype(lstm_output.dtype).itemsize
    tb, tt = _choose_tiles(B, T, H, itemsize, block_budget_bytes)
    grid = (pl.cdiv(B, tb), pl.cdiv(T, tt))

    weight = jnp.asarray(weight, dtype=jnp.float32).reshape(1, H)
    bias_smem = jnp.asarray(bias, dtype=jnp.float32).reshape(1, 1)

    kernel = functools.partial(attention_kernel, t_total=T, t_tile=tt)

    # TODO(synk): if hidden_dim is not a multiple of 128, a wrapper-side pad of
    # H would make every store lane-dense; skipped here to avoid an extra full
    # HBM copy of the (B, T, H) input on this memory-bound kernel.
    return pl.pallas_call(
        kernel,
        out_shape=jax.ShapeDtypeStruct((B, H), lstm_output.dtype),
        grid=grid,
        in_specs=[
            pl.BlockSpec((tb, tt, H), lambda b, t: (b, t, 0)),
            pl.BlockSpec((1, H), lambda b, t: (0, 0)),
            pl.BlockSpec(memory_space=pltpu.MemorySpace.SMEM),
        ],
        out_specs=pl.BlockSpec((tb, H), lambda b, t: (b, 0)),
        scratch_shapes=[
            pltpu.VMEM((tb, 1), jnp.float32),   # running max  m
            pltpu.VMEM((tb, 1), jnp.float32),   # running sum  l
            pltpu.VMEM((tb, H), jnp.float32),   # running ctx  acc
        ],
        compiler_params=pltpu.CompilerParams(
            dimension_semantics=("parallel", "arbitrary"),
            vmem_limit_bytes=_vmem_limit_bytes(),
        ),
    )(lstm_output, weight, bias_smem)


def attention_reference(lstm_output, weight, bias):
    scores = jnp.einsum("bth,oh->bto", lstm_output, weight) + bias[0]  # (B, T, 1)
    attn = jax.nn.softmax(scores, axis=1)
    return jnp.sum(attn * lstm_output, axis=1)


if __name__ == "__main__":
    key = jax.random.PRNGKey(0)
    B, T, H = 2, 8, 32

    k_x, k_w, k_b = jax.random.split(key, 3)
    lstm_output = jax.random.normal(k_x, (B, T, H), dtype=jnp.float32)

    # Deterministic parameter init mimicking nn.Linear(H, 1):
    # uniform(-1/sqrt(H), 1/sqrt(H)) for both weight (1, H) and bias (1,)
    bound = 1.0 / (H ** 0.5)
    weight = jax.random.uniform(k_w, (1, H), jnp.float32, -bound, bound)
    bias = jax.random.uniform(k_b, (1, 1), jnp.float32, -bound, bound)

    ctx = attention_forward(lstm_output, weight, bias)
    ctx = jax.block_until_ready(ctx)

    ref = attention_reference(lstm_output, weight, bias)
    assert ctx.shape == (B, H)
    assert jnp.allclose(ctx, ref, atol=1e-5, rtol=1e-5)

    print("KERNEL_OK")
</pallas_src>

<mosaic_0001>
module attributes {stable_mosaic.version = 11 : i64} {
  func.func @attention_kernel(%arg0: i32, %arg1: i32, %arg2: memref<2x8x32xf32, #tpu.memory_space<vmem>>, %arg3: memref<1x32xf32, #tpu.memory_space<vmem>>, %arg4: memref<1x1xf32, #tpu.memory_space<smem>>, %arg5: memref<2x32xf32, #tpu.memory_space<vmem>>, %arg6: memref<2x1xf32, #tpu.memory_space<vmem>>, %arg7: memref<2x1xf32, #tpu.memory_space<vmem>>, %arg8: memref<2x32xf32, #tpu.memory_space<vmem>>) attributes {dimension_semantics = [#tpu.dimension_semantics<parallel>, #tpu.dimension_semantics<arbitrary>], iteration_bounds = array<i64: 1, 1>, scalar_prefetch = 0 : i64, scratch_operands = 3 : i64, tpu.core_type = #tpu.core_type<tc>, window_params = [{transform_indices = @transform_0, window_bounds = array<i64: 2, 8, 32>}, {pipeline_mode = #tpu.pipeline_mode<synchronous>, transform_indices = @transform_1, window_bounds = array<i64: 1, 32>}, {transform_indices = @transform_2, window_bounds = array<i64: 1, 1>}, {transform_indices = @transform_3, window_bounds = array<i64: 2, 32>}]} {
    %c0_i32 = arith.constant 0 : i32
    %0 = arith.cmpi eq, %arg1, %c0_i32 : i32
    %1 = arith.extui %0 : i1 to i32
    %c0_i32_0 = arith.constant 0 : i32
    %2 = arith.cmpi ne, %1, %c0_i32_0 : i32
    scf.if %2 {
      %cst_24 = arith.constant 0xFF800000 : f32
      %40 = vector.broadcast %cst_24 : f32 to vector<2x1xf32>
      %c0_25 = arith.constant 0 : index
      %c0_26 = arith.constant 0 : index
      %41 = vector.load %arg6[%c0_25, %c0_26] : memref<2x1xf32, #tpu.memory_space<vmem>>, vector<2x1xf32>
      tpu.vector_store %arg6[%c0_25, %c0_26], %40 {strides = array<i32>} : memref<2x1xf32, #tpu.memory_space<vmem>>, vector<2x1xf32>,
      %cst_27 = arith.constant 0.000000e+00 : f32
      %42 = vector.broadcast %cst_27 : f32 to vector<2x1xf32>
      %c0_28 = arith.constant 0 : index
      %c0_29 = arith.constant 0 : index
      %43 = vector.load %arg7[%c0_28, %c0_29] : memref<2x1xf32, #tpu.memory_space<vmem>>, vector<2x1xf32>
      tpu.vector_store %arg7[%c0_28, %c0_29], %42 {strides = array<i32>} : memref<2x1xf32, #tpu.memory_space<vmem>>, vector<2x1xf32>,
      %cst_30 = arith.constant 0.000000e+00 : f32
      %44 = vector.broadcast %cst_30 : f32 to vector<2x32xf32>
      %c0_31 = arith.constant 0 : index
      %c0_32 = arith.constant 0 : index
      %45 = vector.load %arg8[%c0_31, %c0_32] : memref<2x32xf32, #tpu.memory_space<vmem>>, vector<2x32xf32>
      tpu.vector_store %arg8[%c0_31, %c0_32], %44 {strides = array<i32>} : memref<2x32xf32, #tpu.memory_space<vmem>>, vector<2x32xf32>,
    } else {
    }
    %c0 = arith.constant 0 : index
    %c0_1 = arith.constant 0 : index
    %c0_2 = arith.constant 0 : index
    %3 = vector.load %arg2[%c0, %c0_1, %c0_2] : memref<2x8x32xf32, #tpu.memory_space<vmem>>, vector<2x8x32xf32>
    %c0_3 = arith.constant 0 : index
    %c0_4 = arith.constant 0 : index
    %4 = vector.load %arg3[%c0_3, %c0_4] : memref<1x32xf32, #tpu.memory_space<vmem>>, vector<1x32xf32>
    %c0_5 = arith.constant 0 : index
    %c0_6 = arith.constant 0 : index
    %5 = memref.load %arg4[%c0_5, %c0_6] : memref<1x1xf32, #tpu.memory_space<smem>>
    %6 = vector.shape_cast %4 : vector<1x32xf32> to vector<1x1x32xf32>
    %7 = vector.shape_cast %6 : vector<1x1x32xf32> to vector<1x1x32xf32>
    %8 = vector.broadcast %7 : vector<1x1x32xf32> to vector<2x1x32xf32>
    "tpu.trace_start"() <{level = 10 : i32, message = "bqh,bth->bqt"}> : () -> ()
    %cst = arith.constant dense<0.000000e+00> : vector<2x1x8xf32>
    %9 = tpu.matmul %8, %3, %cst {dimension_numbers = #tpu.dot_dimension_numbers<[2], [2], [1], [1], [0, 0, 0, 1, 1, 1], [0], [0]>} : vector<2x1x32xf32>, vector<2x8x32xf32>, vector<2x1x8xf32> -> vector<2x1x8xf32>
    "tpu.trace_stop"() : () -> ()
    %10 = vector.shape_cast %9 : vector<2x1x8xf32> to vector<2x8xf32>
    %11 = vector.broadcast %5 : f32 to vector<2x8xf32>
    %12 = arith.addf %10, %11 : vector<2x8xf32>
    %c0_7 = arith.constant 0 : index
    %c0_8 = arith.constant 0 : index
    %13 = vector.load %arg6[%c0_7, %c0_8] : memref<2x1xf32, #tpu.memory_space<vmem>>, vector<2x1xf32>
    %cst_9 = arith.constant dense<0xFF800000> : vector<2xf32>
    %14 = vector.multi_reduction <maximumf>, %12, %cst_9 [1] : vector<2x8xf32> to vector<2xf32>
    %15 = vector.shape_cast %14 : vector<2xf32> to vector<2x1xf32>
    %16 = arith.maximumf %13, %15 : vector<2x1xf32>
    %17 = arith.subf %13, %16 : vector<2x1xf32>
    %18 = math.exp %17 : vector<2x1xf32>
    %19 = vector.broadcast %16 : vector<2x1xf32> to vector<2x8xf32>
    %20 = arith.subf %12, %19 : vector<2x8xf32>
    %21 = math.exp %20 : vector<2x8xf32>
    %c0_10 = arith.constant 0 : index
    %c0_11 = arith.constant 0 : index
    %22 = vector.load %arg7[%c0_10, %c0_11] : memref<2x1xf32, #tpu.memory_space<vmem>>, vector<2x1xf32>
    %23 = arith.mulf %18, %22 : vector<2x1xf32>
    %cst_12 = arith.constant dense<0.000000e+00> : vector<2xf32>
    %24 = vector.multi_reduction <add>, %21, %cst_12 [1] : vector<2x8xf32> to vector<2xf32>
    %25 = vector.shape_cast %24 : vector<2xf32> to vector<2x1xf32>
    %26 = arith.addf %23, %25 : vector<2x1xf32>
    %c0_13 = arith.constant 0 : index
    %c0_14 = arith.constant 0 : index
    %27 = vector.load %arg7[%c0_13, %c0_14] : memref<2x1xf32, #tpu.memory_space<vmem>>, vector<2x1xf32>
    tpu.vector_store %arg7[%c0_13, %c0_14], %26 {strides = array<i32>} : memref<2x1xf32, #tpu.memory_space<vmem>>, vector<2x1xf32>,
    %28 = vector.shape_cast %21 : vector<2x8xf32> to vector<2x1x8xf32>
    "tpu.trace_start"() <{level = 10 : i32, message = "bqt,bth->bqh"}> : () -> ()
    %cst_15 = arith.constant dense<0.000000e+00> : vector<2x1x32xf32>
    %29 = tpu.matmul %28, %3, %cst_15 {dimension_numbers = #tpu.dot_dimension_numbers<[2], [1], [1], [2], [0, 0, 0, 1, 1, 2], [0], [0]>} : vector<2x1x8xf32>, vector<2x8x32xf32>, vector<2x1x32xf32> -> vector<2x1x32xf32>
    "tpu.trace_stop"() : () -> ()
    %30 = vector.shape_cast %29 : vector<2x1x32xf32> to vector<2x32xf32>
    %c0_16 = arith.constant 0 : index
    %c0_17 = arith.constant 0 : index
    %31 = vector.load %arg8[%c0_16, %c0_17] : memref<2x32xf32, #tpu.memory_space<vmem>>, vector<2x32xf32>
    %32 = vector.broadcast %18 : vector<2x1xf32> to vector<2x32xf32>
    %33 = arith.mulf %32, %31 : vector<2x32xf32>
    %34 = arith.addf %33, %30 : vector<2x32xf32>
    %c0_18 = arith.constant 0 : index
    %c0_19 = arith.constant 0 : index
    %35 = vector.load %arg8[%c0_18, %c0_19] : memref<2x32xf32, #tpu.memory_space<vmem>>, vector<2x32xf32>
    tpu.vector_store %arg8[%c0_18, %c0_19], %34 {strides = array<i32>} : memref<2x32xf32, #tpu.memory_space<vmem>>, vector<2x32xf32>,
    %c0_20 = arith.constant 0 : index
    %c0_21 = arith.constant 0 : index
    %36 = vector.load %arg6[%c0_20, %c0_21] : memref<2x1xf32, #tpu.memory_space<vmem>>, vector<2x1xf32>
    tpu.vector_store %arg6[%c0_20, %c0_21], %16 {strides = array<i32>} : memref<2x1xf32, #tpu.memory_space<vmem>>, vector<2x1xf32>,
    %c0_i32_22 = arith.constant 0 : i32
    %37 = arith.cmpi eq, %arg1, %c0_i32_22 : i32
    %38 = arith.extui %37 : i1 to i32
    %c0_i32_23 = arith.constant 0 : i32
    %39 = arith.cmpi ne, %38, %c0_i32_23 : i32
    scf.if %39 {
      %c0_24 = arith.constant 0 : index
      %c0_25 = arith.constant 0 : index
      %40 = vector.load %arg8[%c0_24, %c0_25] : memref<2x32xf32, #tpu.memory_space<vmem>>, vector<2x32xf32>
      %c0_26 = arith.constant 0 : index
      %c0_27 = arith.constant 0 : index
      %41 = vector.load %arg7[%c0_26, %c0_27] : memref<2x1xf32, #tpu.memory_space<vmem>>, vector<2x1xf32>
      %42 = vector.broadcast %41 : vector<2x1xf32> to vector<2x32xf32>
      %43 = arith.divf %40, %42 : vector<2x32xf32>
      %c0_28 = arith.constant 0 : index
      %c0_29 = arith.constant 0 : index
      %44 = vector.load %arg5[%c0_28, %c0_29] : memref<2x32xf32, #tpu.memory_space<vmem>>, vector<2x32xf32>
      tpu.vector_store %arg5[%c0_28, %c0_29], %43 {strides = array<i32>} : memref<2x32xf32, #tpu.memory_space<vmem>>, vector<2x32xf32>,
    } else {
    }
    return
  }
  func.func @transform_0(%arg0: i32, %arg1: i32) -> (i32, i32, i32) {
    %c0_i32 = arith.constant 0 : i32
    %c0_i32_0 = arith.constant 0 : i32
    return %arg0, %arg1, %c0_i32 : i32, i32, i32
  }
  func.func @transform_1(%arg0: i32, %arg1: i32) -> (i32, i32) {
    %c0_i32 = arith.constant 0 : i32
    %c0_i32_0 = arith.constant 0 : i32
    %c0_i32_1 = arith.constant 0 : i32
    return %c0_i32, %c0_i32_0 : i32, i32
  }
  func.func @transform_2(%arg0: i32, %arg1: i32) -> (i32, i32) {
    %c0_i32 = arith.constant 0 : i32
    %c0_i32_0 = arith.constant 0 : i32
    %c0_i32_1 = arith.constant 0 : i32
    return %c0_i32, %c0_i32_0 : i32, i32
  }
  func.func @transform_3(%arg0: i32, %arg1: i32) -> (i32, i32) {
    %c0_i32 = arith.constant 0 : i32
    %c0_i32_0 = arith.constant 0 : i32
    return %arg0, %c0_i32 : i32, i32
  }
}

</mosaic_0001>

<llo_original>
// kernel: tpu_custom_call.1
$region0: #{tpu_custom_call.1}
  #allocation0 [shape = 'u32[]', space=smem, size = 0x4, offset = 0x4, fixed_abs, tag = 'smem constant byte address 0x4 - core index']
  #allocation1 [shape = 'u32[144,128]{1,0:T(1,128)}', space=vmem, size = 0x12000, scoped, tag = 'internal scratch']
  #allocation2 [shape = 'f32[2,1]{1,0:T(2,128)}', space=vmem, size = 0x400, scoped, tag = 'scratch operand']
  #allocation3 [shape = 'f32[2,1]{1,0:T(2,128)}', space=vmem, size = 0x400, scoped, tag = 'scratch operand']
  #allocation4 [shape = 'f32[2,32]{1,0:T(2,128)}', space=vmem, size = 0x400, scoped, tag = 'scratch operand']
  #allocation5 [shape = 'f32[1,1]{1,0:T(1,128)S(6)}', space=smem, size = 0x200, scoped, tag = 'scoped memory for tpu_custom_call.1']
  %s0 = inlined_call_operand.hbm [shape: f32[2,8,32], index: 0, kind: input, shape index: {}]
  %s1 = inlined_call_operand.vmem [shape: f32[1,32], index: 1, kind: input, shape index: {}]
  %s2 = inlined_call_operand.<no memory space> [shape: f32[1,1], index: 2, kind: input, shape index: {}]
  %s3 = inlined_call_operand.hbm [shape: f32[2,32], index: 3, kind: output, shape index: {}]
  %s4 = sld [smem:[#allocation0]]
  $region34: #{tpu_custom_call.1} parent=0
    _
  %s6 = ssub.s32 1, %s4
  %s7 = scalar_select 0, %s6, %s4
  %8 = sst [smem:[#allocation5]] %s2
  $region1: #{tpu_custom_call.1} parent=0
    #allocation6 [shape = 'u8[8192]{0}', space=vmem, size = 0x2000, scoped, tag = 'input window, operand 0, single buffered']
    #allocation7 [shape = 's32[1]{0}', space=sflag, size = 0x4, scoped, tag = 'scoped memory for tpu_custom_call.1']
    #allocation8 [shape = 's32[1]{0}', space=sflag, size = 0x4, scoped, tag = 'scoped memory for tpu_custom_call.1']
    #allocation9 [shape = 'u8[1024]{0}', space=vmem, size = 0x400, scoped, tag = 'output window, operand 0, single buffered']
    %9 = vsyncpa [#allocation7], 0
    %10 = vsyncpa [#allocation8], 0
    // Predicated region
    $region2: #{tpu_custom_call.1} parent=1 // pred_check
      _
    $region3: #{tpu_custom_call.1} parent=1 // pred_check_branch
      %12 = sbr.rel (0) target = $region5
    $region4: #{tpu_custom_call.1} parent=1 // pred_region
      %s14 = ssub.s32 256, 256
      %15 = vsyncadd [#allocation7], %s14
      %s16 = sshll.u32 [#allocation6], 4
      %s17 = int_to_ptr.vmem [resolvable:$true] %s16
      %22 = dma.hbm_to_vmem [thread:$0]  %s0, 256, %s17, [#allocation7], 128, 128, 8
    $region5: #{tpu_custom_call.1} parent=1 // pred_fallthru
      _
    // Predicated region
    $region6: #{tpu_custom_call.1} parent=1 // pred_check
      _
    $region7: #{tpu_custom_call.1} parent=1 // pred_check_branch
      %24 = sbr.rel (0) target = $region9
    $region8: #{tpu_custom_call.1} parent=1 // pred_region
      _
    $region9: #{tpu_custom_call.1} parent=1 // pred_fallthru
      _
    // Predicated region
    $region10: #{tpu_custom_call.1} parent=1 // pred_check
      _
    $region11: #{tpu_custom_call.1} parent=1 // pred_check_branch
      %26 = sbr.rel (0) target = $region13
    $region12: #{tpu_custom_call.1} parent=1 // pred_region
      _
    $region13: #{tpu_custom_call.1} parent=1 // pred_fallthru
      _
    // Predicated region
    $region14: #{tpu_custom_call.1} parent=1 // pred_check
      _
    $region15: #{tpu_custom_call.1} parent=1 // pred_check_branch
      %28 = sbr.rel (0) target = $region17
    $region16: #{tpu_custom_call.1} parent=1 // pred_region
      %29 = dma.done [#allocation7], 256
    $region17: #{tpu_custom_call.1} parent=1 // pred_fallthru
      _
    %p30 = scmp.eq.s32.totalorder 0, 0
    // Predicated region
    $region18: #{tpu_custom_call.1} parent=1 // pred_check
      %p31 = pneg %p30
    $region19: #{tpu_custom_call.1} parent=1 // pred_check_branch
      %33 = sbr.rel (%p31) target = $region21
    $region20: #{tpu_custom_call.1} parent=1 // pred_region
      %vm34 = vcmask 1024
      %35 = vst.msk [vmem:[#allocation2] sm:$0x3] %vm34, -inf
      %36 = vst.msk [vmem:[#allocation3] sm:$0x3] %vm34, 0.0
      %vm37 = vcmask 254976
      %38 = vst.msk [vmem:[#allocation4] sm:$0x3] %vm37, 0.0
    $region21: #{tpu_custom_call.1} parent=1 // pred_fallthru
      _
    %v39 = vld [vmem:[#allocation6] sm:$0xff]
    %v40 = vld [vmem:[#allocation6 + $0x8] sm:$0xff]
    %v41 = vld [vmem:[%s1] sm:$0x1]
    %s42 = sld [smem:[#allocation5]]
    %vm43 = vcmask 261120
    %v45 = vsel %vm43, %v41, 0
    %v48 = vsel %vm43, %v39, 0
    %50 = vmatprep.subr.mxu0 0.0
    %51 = vmatpush1.xpose.msra.mxu0 0.0
    %52 = vmatprep.subr.mxu0 0.0
    %53 = vmatpush1.xpose.msra.mxu0 0.0
    %54 = vmatprep.subr.mxu0 0.0
    %55 = vmatpush1.xpose.msra.mxu0 0.0
    %56 = vmatprep.subr.mxu0 0.0
    %57 = vmatpush1.xpose.msra.mxu0 0.0
    %58 = vmatprep.subr.mxu0 0.0
    %59 = vmatpush1.xpose.msra.mxu0 0.0
    %60 = vmatprep.subr.mxu0 0.0
    %61 = vmatpush1.xpose.msra.mxu0 0.0
    %62 = vmatprep.subr.mxu0 0.0
    %63 = vmatpush1.xpose.msra.mxu0 0.0
    %64 = vmatprep.subr.mxu0 0.0
    %65 = vmatpush1.xpose.msra.mxu0 0.0
    %66 = vmatprep.subr.mxu0 0.0
    %67 = vmatpush1.xpose.msra.mxu0 0.0
    %68 = vmatprep.subr.mxu0 0.0
    %69 = vmatpush1.xpose.msra.mxu0 0.0
    %70 = vmatprep.subr.mxu0 0.0
    %71 = vmatpush1.xpose.msra.mxu0 0.0
    %72 = vmatprep.subr.mxu0 0.0
    %73 = vmatpush1.xpose.msra.mxu0 0.0
    %74 = vmatprep.subr.mxu0 0.0
    %75 = vmatpush1.xpose.msra.mxu0 0.0
    %76 = vmatprep.subr.mxu0 0.0
    %77 = vmatpush1.xpose.msra.mxu0 0.0
    %78 = vmatprep.subr.mxu0 0.0
    %79 = vmatpush1.xpose.msra.mxu0 0.0
    %80 = vmatprep.subr.mxu0 0.0
    %81 = vmatpush1.xpose.msra.mxu0 %v48
    %82 = vmatprep.subr.mxu0 0.0
    %83 = vmatpush2.xpose.msra.mxu0 0.0
    %84 = vmatprep.subr.mxu0 0.0
    %85 = vmatpush2.xpose.msra.mxu0 0.0
    %86 = vmatprep.subr.mxu0 0.0
    %87 = vmatpush2.xpose.msra.mxu0 0.0
    %88 = vmatprep.subr.mxu0 0.0
    %89 = vmatpush2.xpose.msra.mxu0 0.0
    %90 = vmatprep.subr.mxu0 0.0
    %91 = vmatpush2.xpose.msra.mxu0 0.0
    %92 = vmatprep.subr.mxu0 0.0
    %93 = vmatpush2.xpose.msra.mxu0 0.0
    %94 = vmatprep.subr.mxu0 0.0
    %95 = vmatpush2.xpose.msra.mxu0 0.0
    %96 = vmatprep.subr.mxu0 0.0
    %97 = vmatpush2.xpose.msra.mxu0 0.0
    %98 = vmatprep.subr.mxu0 0.0
    %99 = vmatpush2.xpose.msra.mxu0 0.0
    %100 = vmatprep.subr.mxu0 0.0
    %101 = vmatpush2.xpose.msra.mxu0 0.0
    %102 = vmatprep.subr.mxu0 0.0
    %103 = vmatpush2.xpose.msra.mxu0 0.0
    %104 = vmatprep.subr.mxu0 0.0
    %105 = vmatpush2.xpose.msra.mxu0 0.0
    %106 = vmatprep.subr.mxu0 0.0
    %107 = vmatpush2.xpose.msra.mxu0 0.0
    %108 = vmatprep.subr.mxu0 0.0
    %109 = vmatpush2.xpose.msra.mxu0 0.0
    %110 = vmatprep.subr.mxu0 0.0
    %111 = vmatpush2.xpose.msra.mxu0 0.0
    %112 = vmatprep.subr.mxu0 0.0
    %113 = vmatpush2.xpose.msra.mxu0 0.0
    %114 = vmatprep.mubr.f32.mxu0 0.0
    %115 = vmatmul.mubr.f32.gmra.mxu0 %v45
    %v116 = vpop.f32.mrf.mxu0
    %v117 = vadd.f32 0.0, %v116
    %v118 = vpop.f32.mrf.mxu0
    %119 = vdwg.mxu0
    %v121 = vsel %vm43, %v40, 0
    %123 = vmatprep.subr.mxu0 0.0
    %124 = vmatpush1.xpose.msra.mxu0 0.0
    %125 = vmatprep.subr.mxu0 0.0
    %126 = vmatpush1.xpose.msra.mxu0 0.0
    %127 = vmatprep.subr.mxu0 0.0
    %128 = vmatpush1.xpose.msra.mxu0 0.0
    %129 = vmatprep.subr.mxu0 0.0
    %130 = vmatpush1.xpose.msra.mxu0 0.0
    %131 = vmatprep.subr.mxu0 0.0
    %132 = vmatpush1.xpose.msra.mxu0 0.0
    %133 = vmatprep.subr.mxu0 0.0
    %134 = vmatpush1.xpose.msra.mxu0 0.0
    %135 = vmatprep.subr.mxu0 0.0
    %136 = vmatpush1.xpose.msra.mxu0 0.0
    %137 = vmatprep.subr.mxu0 0.0
    %138 = vmatpush1.xpose.msra.mxu0 0.0
    %139 = vmatprep.subr.mxu0 0.0
    %140 = vmatpush1.xpose.msra.mxu0 0.0
    %141 = vmatprep.subr.mxu0 0.0
    %142 = vmatpush1.xpose.msra.mxu0 0.0
    %143 = vmatprep.subr.mxu0 0.0
    %144 = vmatpush1.xpose.msra.mxu0 0.0
    %145 = vmatprep.subr.mxu0 0.0
    %146 = vmatpush1.xpose.msra.mxu0 0.0
    %147 = vmatprep.subr.mxu0 0.0
    %148 = vmatpush1.xpose.msra.mxu0 0.0
    %149 = vmatprep.subr.mxu0 0.0
    %150 = vmatpush1.xpose.msra.mxu0 0.0
    %151 = vmatprep.subr.mxu0 0.0
    %152 = vmatpush1.xpose.msra.mxu0 0.0
    %153 = vmatprep.subr.mxu0 0.0
    %154 = vmatpush1.xpose.msra.mxu0 %v121
    %155 = vmatprep.subr.mxu0 0.0
    %156 = vmatpush2.xpose.msra.mxu0 0.0
    %157 = vmatprep.subr.mxu0 0.0
    %158 = vmatpush2.xpose.msra.mxu0 0.0
    %159 = vmatprep.subr.mxu0 0.0
    %160 = vmatpush2.xpose.msra.mxu0 0.0
    %161 = vmatprep.subr.mxu0 0.0
    %162 = vmatpush2.xpose.msra.mxu0 0.0
    %163 = vmatprep.subr.mxu0 0.0
    %164 = vmatpush2.xpose.msra.mxu0 0.0
    %165 = vmatprep.subr.mxu0 0.0
    %166 = vmatpush2.xpose.msra.mxu0 0.0
    %167 = vmatprep.subr.mxu0 0.0
    %168 = vmatpush2.xpose.msra.mxu0 0.0
    %169 = vmatprep.subr.mxu0 0.0
    %170 = vmatpush2.xpose.msra.mxu0 0.0
    %171 = vmatprep.subr.mxu0 0.0
    %172 = vmatpush2.xpose.msra.mxu0 0.0
    %173 = vmatprep.subr.mxu0 0.0
    %174 = vmatpush2.xpose.msra.mxu0 0.0
    %175 = vmatprep.subr.mxu0 0.0
    %176 = vmatpush2.xpose.msra.mxu0 0.0
    %177 = vmatprep.subr.mxu0 0.0
    %178 = vmatpush2.xpose.msra.mxu0 0.0
    %179 = vmatprep.subr.mxu0 0.0
    %180 = vmatpush2.xpose.msra.mxu0 0.0
    %181 = vmatprep.subr.mxu0 0.0
    %182 = vmatpush2.xpose.msra.mxu0 0.0
    %183 = vmatprep.subr.mxu0 0.0
    %184 = vmatpush2.xpose.msra.mxu0 0.0
    %185 = vmatprep.subr.mxu0 0.0
    %186 = vmatpush2.xpose.msra.mxu0 0.0
    %187 = vmatprep.mubr.f32.mxu0 0.0
    %188 = vmatmul.mubr.f32.gmra.mxu0 %v45
    %v189 = vpop.f32.mrf.mxu0
    %v190 = vadd.f32 0.0, %v189
    %v191 = vpop.f32.mrf.mxu0
    %192 = vdwg.mxu0
    %v193 = vstv %s42
    %v194 = vadd.f32 %v117, %v193
    %v195 = vadd.f32 %v190, %v193
    %v196 = vld [vmem:[#allocation2] sm:$0x3]
    %v199 = vrot.slane %v195, 7
    %vm200 = vcmask 1041409
    %v201 = vsel %vm200, %v199, %v194
    %vm203 = vcmask 58368
    %v204 = vsel %vm203, %v201, -inf
    %205 = vmax.xlane.f32.xlu0 %v204
    %v206 = vpop.xlane.xlu0 %205
    %v207 = vmax.f32 %v196, %v206
    %v208 = vsub.f32 %v196, %v207
    %v209 = vmul.f32 %v208, 1.442695
    %v210 = vpow.pop %v209
    %212 = vset.pattern.permute.xlu0 0
    %213 = vperm.xlu0 %212, %v207
    %v214 = vpop.permute.xlu0 %213
    %v215 = vrot.slane %v214, 1
    %v218 = vsub.f32 %v194, %v214
    %v219 = vsub.f32 %v195, %v215
    %v220 = vmul.f32 %v218, 1.442695
    %v221 = vpow.pop %v220
    %v222 = vmul.f32 %v219, 1.442695
    %v223 = vpow.pop %v222
    %v224 = vld [vmem:[#allocation3] sm:$0x3]
    %v225 = vmul.f32 %v210, %v224
    %v228 = vrot.slane %v223, 7
    %v229 = vsel %vm200, %v228, %v221
    %v231 = vsel %vm203, %v229, 0.0
    %232 = vadd.xlane.f32.xlu0 %v231
    %v233 = vpop.xlane.xlu0 %232
    %v234 = vadd.f32 %v225, %v233
    %vm235 = vcmask 1024
    %236 = vst.msk [vmem:[#allocation3] sm:$0x3] %vm235, %v234
    %vm237 = vcmask 64512
    %v238 = vsel %vm237, %v221, 0
    %240 = vmatprep.subr.mxu0 0.0
    %241 = vmatpush1.msra.mxu0 0.0
    %242 = vmatprep.subr.mxu0 0.0
    %243 = vmatpush1.msra.mxu0 0.0
    %244 = vmatprep.subr.mxu0 0.0
    %245 = vmatpush1.msra.mxu0 0.0
    %246 = vmatprep.subr.mxu0 0.0
    %247 = vmatpush1.msra.mxu0 0.0
    %248 = vmatprep.subr.mxu0 0.0
    %249 = vmatpush1.msra.mxu0 0.0
    %250 = vmatprep.subr.mxu0 0.0
    %251 = vmatpush1.msra.mxu0 0.0
    %252 = vmatprep.subr.mxu0 0.0
    %253 = vmatpush1.msra.mxu0 0.0
    %254 = vmatprep.subr.mxu0 0.0
    %255 = vmatpush1.msra.mxu0 0.0
    %256 = vmatprep.subr.mxu0 0.0
    %257 = vmatpush1.msra.mxu0 0.0
    %258 = vmatprep.subr.mxu0 0.0
    %259 = vmatpush1.msra.mxu0 0.0
    %260 = vmatprep.subr.mxu0 0.0
    %261 = vmatpush1.msra.mxu0 0.0
    %262 = vmatprep.subr.mxu0 0.0
    %263 = vmatpush1.msra.mxu0 0.0
    %264 = vmatprep.subr.mxu0 0.0
    %265 = vmatpush1.msra.mxu0 0.0
    %266 = vmatprep.subr.mxu0 0.0
    %267 = vmatpush1.msra.mxu0 0.0
    %268 = vmatprep.subr.mxu0 0.0
    %269 = vmatpush1.msra.mxu0 0.0
    %270 = vmatprep.subr.mxu0 0.0
    %271 = vmatpush1.msra.mxu0 %v39
    %272 = vmatprep.subr.mxu0 0.0
    %273 = vmatpush2.msra.mxu0 0.0
    %274 = vmatprep.subr.mxu0 0.0
    %275 = vmatpush2.msra.mxu0 0.0
    %276 = vmatprep.subr.mxu0 0.0
    %277 = vmatpush2.msra.mxu0 0.0
    %278 = vmatprep.subr.mxu0 0.0
    %279 = vmatpush2.msra.mxu0 0.0
    %280 = vmatprep.subr.mxu0 0.0
    %281 = vmatpush2.msra.mxu0 0.0
    %282 = vmatprep.subr.mxu0 0.0
    %283 = vmatpush2.msra.mxu0 0.0
    %284 = vmatprep.subr.mxu0 0.0
    %285 = vmatpush2.msra.mxu0 0.0
    %286 = vmatprep.subr.mxu0 0.0
    %287 = vmatpush2.msra.mxu0 0.0
    %288 = vmatprep.subr.mxu0 0.0
    %289 = vmatpush2.msra.mxu0 0.0
    %290 = vmatprep.subr.mxu0 0.0
    %291 = vmatpush2.msra.mxu0 0.0
    %292 = vmatprep.subr.mxu0 0.0
    %293 = vmatpush2.msra.mxu0 0.0
    %294 = vmatprep.subr.mxu0 0.0
    %295 = vmatpush2.msra.mxu0 0.0
    %296 = vmatprep.subr.mxu0 0.0
    %297 = vmatpush2.msra.mxu0 0.0
    %298 = vmatprep.subr.mxu0 0.0
    %299 = vmatpush2.msra.mxu0 0.0
    %300 = vmatprep.subr.mxu0 0.0
    %301 = vmatpush2.msra.mxu0 0.0
    %302 = vmatprep.subr.mxu0 0.0
    %303 = vmatpush2.msra.mxu0 0.0
    %304 = vmatprep.mubr.f32.mxu0 0.0
    %305 = vmatmul.mubr.f32.gmra.mxu0 %v238
    %v306 = vpop.f32.mrf.mxu0
    %v307 = vadd.f32 0.0, %v306
    %v308 = vpop.f32.mrf.mxu0
    %309 = vdwg.mxu0
    %v310 = vsel %vm237, %v223, 0
    %312 = vmatprep.subr.mxu0 0.0
    %313 = vmatpush1.msra.mxu0 0.0
    %314 = vmatprep.subr.mxu0 0.0
    %315 = vmatpush1.msra.mxu0 0.0
    %316 = vmatprep.subr.mxu0 0.0
    %317 = vmatpush1.msra.mxu0 0.0
    %318 = vmatprep.subr.mxu0 0.0
    %319 = vmatpush1.msra.mxu0 0.0
    %320 = vmatprep.subr.mxu0 0.0
    %321 = vmatpush1.msra.mxu0 0.0
    %322 = vmatprep.subr.mxu0 0.0
    %323 = vmatpush1.msra.mxu0 0.0
    %324 = vmatprep.subr.mxu0 0.0
    %325 = vmatpush1.msra.mxu0 0.0
    %326 = vmatprep.subr.mxu0 0.0
    %327 = vmatpush1.msra.mxu0 0.0
    %328 = vmatprep.subr.mxu0 0.0
    %329 = vmatpush1.msra.mxu0 0.0
    %330 = vmatprep.subr.mxu0 0.0
    %331 = vmatpush1.msra.mxu0 0.0
    %332 = vmatprep.subr.mxu0 0.0
    %333 = vmatpush1.msra.mxu0 0.0
    %334 = vmatprep.subr.mxu0 0.0
    %335 = vmatpush1.msra.mxu0 0.0
    %336 = vmatprep.subr.mxu0 0.0
    %337 = vmatpush1.msra.mxu0 0.0
    %338 = vmatprep.subr.mxu0 0.0
    %339 = vmatpush1.msra.mxu0 0.0
    %340 = vmatprep.subr.mxu0 0.0
    %341 = vmatpush1.msra.mxu0 0.0
    %342 = vmatprep.subr.mxu0 0.0
    %343 = vmatpush1.msra.mxu0 %v40
    %344 = vmatprep.subr.mxu0 0.0
    %345 = vmatpush2.msra.mxu0 0.0
    %346 = vmatprep.subr.mxu0 0.0
    %347 = vmatpush2.msra.mxu0 0.0
    %348 = vmatprep.subr.mxu0 0.0
    %349 = vmatpush2.msra.mxu0 0.0
    %350 = vmatprep.subr.mxu0 0.0
    %351 = vmatpush2.msra.mxu0 0.0
    %352 = vmatprep.subr.mxu0 0.0
    %353 = vmatpush2.msra.mxu0 0.0
    %354 = vmatprep.subr.mxu0 0.0
    %355 = vmatpush2.msra.mxu0 0.0
    %356 = vmatprep.subr.mxu0 0.0
    %357 = vmatpush2.msra.mxu0 0.0
    %358 = vmatprep.subr.mxu0 0.0
    %359 = vmatpush2.msra.mxu0 0.0
    %360 = vmatprep.subr.mxu0 0.0
    %361 = vmatpush2.msra.mxu0 0.0
    %362 = vmatprep.subr.mxu0 0.0
    %363 = vmatpush2.msra.mxu0 0.0
    %364 = vmatprep.subr.mxu0 0.0
    %365 = vmatpush2.msra.mxu0 0.0
    %366 = vmatprep.subr.mxu0 0.0
    %367 = vmatpush2.msra.mxu0 0.0
    %368 = vmatprep.subr.mxu0 0.0
    %369 = vmatpush2.msra.mxu0 0.0
    %370 = vmatprep.subr.mxu0 0.0
    %371 = vmatpush2.msra.mxu0 0.0
    %372 = vmatprep.subr.mxu0 0.0
    %373 = vmatpush2.msra.mxu0 0.0
    %374 = vmatprep.subr.mxu0 0.0
    %375 = vmatpush2.msra.mxu0 0.0
    %376 = vmatprep.mubr.f32.mxu0 0.0
    %377 = vmatmul.mubr.f32.gmra.mxu0 %v310
    %v378 = vpop.f32.mrf.mxu0
    %v379 = vadd.f32 0.0, %v378
    %v380 = vpop.f32.mrf.mxu0
    %381 = vdwg.mxu0
    %v382 = vld [vmem:[#allocation4] sm:$0x3]
    %384 = vset.pattern.permute.xlu0 0
    %385 = vperm.xlu0 %384, %v210
    %v386 = vpop.permute.xlu0 %385
    %v388 = vmul.f32 %v386, %v382
    %v391 = vrot.slane %v379, 7
    %v392 = vsel %vm200, %v391, %v307
    %v394 = vadd.f32 %v388, %v392
    %vm395 = vcmask 254976
    %396 = vst.msk [vmem:[#allocation4] sm:$0x3] %vm395, %v394
    %397 = vst.msk [vmem:[#allocation2] sm:$0x3] %vm235, %v207
    // Predicated region
    $region22: #{tpu_custom_call.1} parent=1 // pred_check
      %p398 = pneg %p30
    $region23: #{tpu_custom_call.1} parent=1 // pred_check_branch
      %400 = sbr.rel (%p398) target = $region25
    $region24: #{tpu_custom_call.1} parent=1 // pred_region
      %v401 = vld [vmem:[#allocation4] sm:$0x3]
      %v402 = vld [vmem:[#allocation3] sm:$0x3]
      %404 = vset.pattern.permute.xlu0 0
      %405 = vperm.xlu0 %404, %v402
      %v406 = vpop.permute.xlu0 %405
      %v408 = vrcp.pop %v406
      %v409 = vmul.f32 %v401, %v408
      %410 = vst.msk [vmem:[#allocation9] sm:$0x3] %vm395, %v409
    $region25: #{tpu_custom_call.1} parent=1 // pred_fallthru
      _
    // Predicated region
    $region26: #{tpu_custom_call.1} parent=1 // pred_check
      _
    $region27: #{tpu_custom_call.1} parent=1 // pred_check_branch
      %412 = sbr.rel (0) target = $region29
    $region28: #{tpu_custom_call.1} parent=1 // pred_region
      %s414 = ssub.s32 32, 32
      %415 = vsyncadd [#allocation8], %s414
      %s417 = sshll.u32 [#allocation9], 4
      %s418 = int_to_ptr.vmem [resolvable:$true] %s417
      %420 = dma.vmem_to_hbm [thread:$0]  %s418, 32, %s3, [#allocation8]
    $region29: #{tpu_custom_call.1} parent=1 // pred_fallthru
      _
    // Predicated region
    $region30: #{tpu_custom_call.1} parent=1 // pred_check
      _
    $region31: #{tpu_custom_call.1} parent=1 // pred_check_branch
      %422 = sbr.rel (0) target = $region33
    $region32: #{tpu_custom_call.1} parent=1 // pred_region
      %423 = dma.done [#allocation8], 32
    $region33: #{tpu_custom_call.1} parent=1 // pred_fallthru
      _
    %424 = vsyncpa [#allocation7], 1
    %425 = vsyncpa [#allocation8], 1

</llo_original>
